<compile_context>
chip_gen: v5e
topology: v5e:2x2
jax: 0.10.0
libtpu: 0.0.40
codegen_flags: <defaults>
</compile_context>

<pallas_src>
import jax
import jax.numpy as jnp
from jax.experimental import pallas as pl
from jax.experimental.pallas import tpu as pltpu

IN_DIM = 4
IN_PAD = 8       # pad layer-1 contracting dim to the f32 sublane tile
HIDDEN = 64
MAX_TB = 1024    # rows per grid step for large batches (amortizes ~0.35us/step)


def _xavier_uniform(key, fan_in, fan_out, dtype=jnp.float32):
    # matches torch.nn.init.xavier_uniform_ (gain=1)
    limit = jnp.sqrt(6.0 / (fan_in + fan_out)).astype(dtype)
    return jax.random.uniform(
        key, (fan_in, fan_out), dtype=dtype, minval=-limit, maxval=limit
    )


def dqn_kernel(x_ref, w1_ref, b1_ref, w2_ref, b2_ref, w3t_ref, b3_ref, o_ref):
    # Fused MLP hot path for one batch tile: 2 MXU matmuls + VPU bias/ReLU,
    # final layer as VPU mul + cross-lane reduce (XLU), all in VMEM.
    x = x_ref[...]
    h1 = jnp.dot(x, w1_ref[...], preferred_element_type=jnp.float32) + b1_ref[...]
    h1 = jnp.maximum(h1, 0.0)
    h2 = jnp.dot(h1, w2_ref[...], preferred_element_type=jnp.float32) + b2_ref[...]
    h2 = jnp.maximum(h2, 0.0)
    # (TB, 64) * (1, 64) -> reduce over lanes -> (TB, 1). Avoids an N=1 MXU pass.
    out = jnp.sum(h2 * w3t_ref[...], axis=-1, keepdims=True) + b3_ref[...]
    o_ref[...] = out.astype(o_ref.dtype)


def deep_q_network(x, params, *, tb=None):
    """x: (B, 4) float32 -> (B, 1) float32."""
    w1, b1, w2, b2, w3, b3 = params
    B = x.shape[0]

    # Pick a batch tile: multiple of 8 (sublane), capped at MAX_TB.
    if tb is None:
        tb = MAX_TB if B >= MAX_TB else max(8, 8 * pl.cdiv(B, 8))
    num_blocks = pl.cdiv(B, tb)
    b_pad = num_blocks * tb

    # Zero-pad batch to a tile multiple and features 4 -> 8; the extra w1 rows
    # are zero so the result is unchanged.
    x_p = jnp.zeros((b_pad, IN_PAD), jnp.float32).at[:B, :IN_DIM].set(x)
    w1_p = jnp.zeros((IN_PAD, HIDDEN), jnp.float32).at[:IN_DIM, :].set(w1)

    # (64, 1) column -> (1, 64) row so the kernel broadcasts it over rows.
    w3t = w3.reshape(1, HIDDEN)

    const = lambda i: (0, 0)  # weights/biases resident across all grid steps
    out = pl.pallas_call(
        dqn_kernel,
        out_shape=jax.ShapeDtypeStruct((b_pad, 1), jnp.float32),
        grid=(num_blocks,),
        in_specs=[
            pl.BlockSpec((tb, IN_PAD), lambda i: (i, 0)),      # x tile
            pl.BlockSpec((IN_PAD, HIDDEN), const),             # w1 (padded)
            pl.BlockSpec((1, HIDDEN), const),                  # b1
            pl.BlockSpec((HIDDEN, HIDDEN), const),             # w2
            pl.BlockSpec((1, HIDDEN), const),                  # b2
            pl.BlockSpec((1, HIDDEN), const),                  # w3 (transposed)
            pl.BlockSpec((1, 1), const),                       # b3
        ],
        out_specs=pl.BlockSpec((tb, 1), lambda i: (i, 0)),
        compiler_params=pltpu.CompilerParams(
            dimension_semantics=("parallel",),  # megacore sharding on v7x
        ),
    )(x_p, w1_p, b1, w2, b2, w3t, b3)
    return out[:B]


def init_params(key):
    k1, k2, k3 = jax.random.split(key, 3)
    w1 = _xavier_uniform(k1, IN_DIM, HIDDEN)
    b1 = jnp.zeros((1, HIDDEN), jnp.float32)
    w2 = _xavier_uniform(k2, HIDDEN, HIDDEN)
    b2 = jnp.zeros((1, HIDDEN), jnp.float32)
    w3 = _xavier_uniform(k3, HIDDEN, 1)
    b3 = jnp.zeros((1, 1), jnp.float32)
    return (w1, b1, w2, b2, w3, b3)


def _reference(x, params):
    w1, b1, w2, b2, w3, b3 = params
    h = jnp.maximum(x @ w1 + b1, 0.0)
    h = jnp.maximum(h @ w2 + b2, 0.0)
    return h @ w3 + b3


if __name__ == "__main__":
    key = jax.random.PRNGKey(0)
    pkey, xkey1, xkey2 = jax.random.split(key, 3)
    params = init_params(pkey)

    # Small batch (single grid step).
    B1 = 16
    x1 = jax.random.normal(xkey1, (B1, IN_DIM), dtype=jnp.float32)
    out1 = deep_q_network(x1, params)
    jax.block_until_ready(out1)
    assert out1.shape == (B1, 1)
    assert jnp.allclose(out1, _reference(x1, params), atol=1e-5, rtol=1e-5)

    # Ragged batch (exercises padding + multi-step grid with a small tile).
    B2 = 300
    x2 = jax.random.normal(xkey2, (B2, IN_DIM), dtype=jnp.float32)
    out2 = deep_q_network(x2, params, tb=128)
    jax.block_until_ready(out2)
    assert out2.shape == (B2, 1)
    assert jnp.allclose(out2, _reference(x2, params), atol=1e-5, rtol=1e-5)

    print("KERNEL_OK")
</pallas_src>

<mosaic_0001>
module attributes {stable_mosaic.version = 11 : i64} {
  func.func @dqn_kernel(%arg0: i32, %arg1: memref<16x8xf32, #tpu.memory_space<vmem>>, %arg2: memref<8x64xf32, #tpu.memory_space<vmem>>, %arg3: memref<1x64xf32, #tpu.memory_space<vmem>>, %arg4: memref<64x64xf32, #tpu.memory_space<vmem>>, %arg5: memref<1x64xf32, #tpu.memory_space<vmem>>, %arg6: memref<1x64xf32, #tpu.memory_space<vmem>>, %arg7: memref<1x1xf32, #tpu.memory_space<vmem>>, %arg8: memref<16x1xf32, #tpu.memory_space<vmem>>) attributes {dimension_semantics = [#tpu.dimension_semantics<parallel>], iteration_bounds = array<i64: 1>, scalar_prefetch = 0 : i64, scratch_operands = 0 : i64, tpu.core_type = #tpu.core_type<tc>, window_params = [{transform_indices = @transform_0, window_bounds = array<i64: 16, 8>}, {pipeline_mode = #tpu.pipeline_mode<synchronous>, transform_indices = @transform_1, window_bounds = array<i64: 8, 64>}, {pipeline_mode = #tpu.pipeline_mode<synchronous>, transform_indices = @transform_2, window_bounds = array<i64: 1, 64>}, {pipeline_mode = #tpu.pipeline_mode<synchronous>, transform_indices = @transform_3, window_bounds = array<i64: 64, 64>}, {pipeline_mode = #tpu.pipeline_mode<synchronous>, transform_indices = @transform_4, window_bounds = array<i64: 1, 64>}, {pipeline_mode = #tpu.pipeline_mode<synchronous>, transform_indices = @transform_5, window_bounds = array<i64: 1, 64>}, {pipeline_mode = #tpu.pipeline_mode<synchronous>, transform_indices = @transform_6, window_bounds = array<i64: 1, 1>}, {transform_indices = @transform_7, window_bounds = array<i64: 16, 1>}]} {
    %c0 = arith.constant 0 : index
    %c0_0 = arith.constant 0 : index
    %0 = vector.load %arg1[%c0, %c0_0] : memref<16x8xf32, #tpu.memory_space<vmem>>, vector<16x8xf32>
    %c0_1 = arith.constant 0 : index
    %c0_2 = arith.constant 0 : index
    %1 = vector.load %arg2[%c0_1, %c0_2] : memref<8x64xf32, #tpu.memory_space<vmem>>, vector<8x64xf32>
    %cst = arith.constant dense<0.000000e+00> : vector<16x64xf32>
    %2 = tpu.matmul %0, %1, %cst {dimension_numbers = #tpu.dot_dimension_numbers<[1], [0], [0], [1], [0, 0, 1, 1], [], []>} : vector<16x8xf32>, vector<8x64xf32>, vector<16x64xf32> -> vector<16x64xf32>
    %c0_3 = arith.constant 0 : index
    %c0_4 = arith.constant 0 : index
    %3 = vector.load %arg3[%c0_3, %c0_4] : memref<1x64xf32, #tpu.memory_space<vmem>>, vector<1x64xf32>
    %4 = vector.broadcast %3 : vector<1x64xf32> to vector<16x64xf32>
    %5 = arith.addf %2, %4 : vector<16x64xf32>
    %cst_5 = arith.constant 0.000000e+00 : f32
    %6 = vector.broadcast %cst_5 : f32 to vector<16x64xf32>
    %7 = arith.maximumf %5, %6 : vector<16x64xf32>
    %c0_6 = arith.constant 0 : index
    %c0_7 = arith.constant 0 : index
    %8 = vector.load %arg4[%c0_6, %c0_7] : memref<64x64xf32, #tpu.memory_space<vmem>>, vector<64x64xf32>
    %cst_8 = arith.constant dense<0.000000e+00> : vector<16x64xf32>
    %9 = tpu.matmul %7, %8, %cst_8 {dimension_numbers = #tpu.dot_dimension_numbers<[1], [0], [0], [1], [0, 0, 1, 1], [], []>} : vector<16x64xf32>, vector<64x64xf32>, vector<16x64xf32> -> vector<16x64xf32>
    %c0_9 = arith.constant 0 : index
    %c0_10 = arith.constant 0 : index
    %10 = vector.load %arg5[%c0_9, %c0_10] : memref<1x64xf32, #tpu.memory_space<vmem>>, vector<1x64xf32>
    %11 = vector.broadcast %10 : vector<1x64xf32> to vector<16x64xf32>
    %12 = arith.addf %9, %11 : vector<16x64xf32>
    %cst_11 = arith.constant 0.000000e+00 : f32
    %13 = vector.broadcast %cst_11 : f32 to vector<16x64xf32>
    %14 = arith.maximumf %12, %13 : vector<16x64xf32>
    %c0_12 = arith.constant 0 : index
    %c0_13 = arith.constant 0 : index
    %15 = vector.load %arg6[%c0_12, %c0_13] : memref<1x64xf32, #tpu.memory_space<vmem>>, vector<1x64xf32>
    %16 = vector.broadcast %15 : vector<1x64xf32> to vector<16x64xf32>
    %17 = arith.mulf %14, %16 : vector<16x64xf32>
    %cst_14 = arith.constant dense<0.000000e+00> : vector<16xf32>
    %18 = vector.multi_reduction <add>, %17, %cst_14 [1] : vector<16x64xf32> to vector<16xf32>
    %19 = vector.shape_cast %18 : vector<16xf32> to vector<16x1xf32>
    %c0_15 = arith.constant 0 : index
    %c0_16 = arith.constant 0 : index
    %20 = vector.load %arg7[%c0_15, %c0_16] : memref<1x1xf32, #tpu.memory_space<vmem>>, vector<1x1xf32>
    %21 = vector.broadcast %20 : vector<1x1xf32> to vector<16x1xf32>
    %22 = arith.addf %19, %21 : vector<16x1xf32>
    %c0_17 = arith.constant 0 : index
    %c0_18 = arith.constant 0 : index
    %23 = vector.load %arg8[%c0_17, %c0_18] : memref<16x1xf32, #tpu.memory_space<vmem>>, vector<16x1xf32>
    tpu.vector_store %arg8[%c0_17, %c0_18], %22 {strides = array<i32>} : memref<16x1xf32, #tpu.memory_space<vmem>>, vector<16x1xf32>,
    return
  }
  func.func @transform_0(%arg0: i32) -> (i32, i32) {
    %c0_i32 = arith.constant 0 : i32
    %c0_i32_0 = arith.constant 0 : i32
    return %arg0, %c0_i32 : i32, i32
  }
  func.func @transform_1(%arg0: i32) -> (i32, i32) {
    %c0_i32 = arith.constant 0 : i32
    %c0_i32_0 = arith.constant 0 : i32
    %c0_i32_1 = arith.constant 0 : i32
    return %c0_i32, %c0_i32_0 : i32, i32
  }
  func.func @transform_2(%arg0: i32) -> (i32, i32) {
    %c0_i32 = arith.constant 0 : i32
    %c0_i32_0 = arith.constant 0 : i32
    %c0_i32_1 = arith.constant 0 : i32
    return %c0_i32, %c0_i32_0 : i32, i32
  }
  func.func @transform_3(%arg0: i32) -> (i32, i32) {
    %c0_i32 = arith.constant 0 : i32
    %c0_i32_0 = arith.constant 0 : i32
    %c0_i32_1 = arith.constant 0 : i32
    return %c0_i32, %c0_i32_0 : i32, i32
  }
  func.func @transform_4(%arg0: i32) -> (i32, i32) {
    %c0_i32 = arith.constant 0 : i32
    %c0_i32_0 = arith.constant 0 : i32
    %c0_i32_1 = arith.constant 0 : i32
    return %c0_i32, %c0_i32_0 : i32, i32
  }
  func.func @transform_5(%arg0: i32) -> (i32, i32) {
    %c0_i32 = arith.constant 0 : i32
    %c0_i32_0 = arith.constant 0 : i32
    %c0_i32_1 = arith.constant 0 : i32
    return %c0_i32, %c0_i32_0 : i32, i32
  }
  func.func @transform_6(%arg0: i32) -> (i32, i32) {
    %c0_i32 = arith.constant 0 : i32
    %c0_i32_0 = arith.constant 0 : i32
    %c0_i32_1 = arith.constant 0 : i32
    return %c0_i32, %c0_i32_0 : i32, i32
  }
  func.func @transform_7(%arg0: i32) -> (i32, i32) {
    %c0_i32 = arith.constant 0 : i32
    %c0_i32_0 = arith.constant 0 : i32
    return %arg0, %c0_i32 : i32, i32
  }
}

</mosaic_0001>

<llo_original>
// kernel: tpu_custom_call.1
$region0: #{tpu_custom_call.1}
  #allocation0 [shape = 'u32[]', space=smem, size = 0x4, offset = 0x4, fixed_abs, tag = 'smem constant byte address 0x4 - core index']
  #allocation1 [shape = 'u32[72,128]{1,0:T(1,128)}', space=vmem, size = 0x9000, scoped, tag = 'internal scratch']
  #allocation2 [shape = 'f32[1,1]{1,0:T(1,128)S(1)}', space=vmem, size = 0x200, scoped, tag = 'scoped memory for tpu_custom_call.1']
  %s0 = inlined_call_operand.vmem [shape: f32[16,8], index: 0, kind: input, shape index: {}]
  %s1 = inlined_call_operand.vmem [shape: f32[8,64], index: 1, kind: input, shape index: {}]
  %s2 = inlined_call_operand.vmem [shape: f32[1,64], index: 2, kind: input, shape index: {}]
  %s3 = inlined_call_operand.hbm [shape: f32[64,64], index: 3, kind: input, shape index: {}]
  %s4 = inlined_call_operand.vmem [shape: f32[1,64], index: 4, kind: input, shape index: {}]
  %s5 = inlined_call_operand.vmem [shape: f32[1,64], index: 5, kind: input, shape index: {}]
  %s6 = inlined_call_operand.<no memory space> [shape: f32[1,1], index: 6, kind: input, shape index: {}]
  %s7 = inlined_call_operand.vmem [shape: f32[16,1], index: 7, kind: output, shape index: {}]
  %s8 = sld [smem:[#allocation0]]
  $region42: #{tpu_custom_call.1} parent=0
    _
  %s10 = ssub.s32 1, %s8
  %s11 = scalar_select 0, %s10, %s8
  %v12 = vstv %s6
  %13 = vst [vmem:[#allocation2] sm:$0x1] %v12
  $region1: #{tpu_custom_call.1} parent=0
    #allocation3 [shape = 'u8[32768]{0}', space=vmem, size = 0x8000, scoped, tag = 'input window, operand 3, single buffered']
    #allocation4 [shape = 's32[1]{0}', space=sflag, size = 0x4, scoped, tag = 'scoped memory for tpu_custom_call.1']
    %14 = vsyncpa [#allocation4], 0
    // Predicated region
    $region2: #{tpu_custom_call.1} parent=1 // pred_check
      _
    $region3: #{tpu_custom_call.1} parent=1 // pred_check_branch
      %16 = sbr.rel (0) target = $region5
    $region4: #{tpu_custom_call.1} parent=1 // pred_region
      _
    $region5: #{tpu_custom_call.1} parent=1 // pred_fallthru
      _
    // Predicated region
    $region6: #{tpu_custom_call.1} parent=1 // pred_check
      _
    $region7: #{tpu_custom_call.1} parent=1 // pred_check_branch
      %18 = sbr.rel (0) target = $region9
    $region8: #{tpu_custom_call.1} parent=1 // pred_region
      _
    $region9: #{tpu_custom_call.1} parent=1 // pred_fallthru
      _
    // Predicated region
    $region10: #{tpu_custom_call.1} parent=1 // pred_check
      _
    $region11: #{tpu_custom_call.1} parent=1 // pred_check_branch
      %20 = sbr.rel (0) target = $region13
    $region12: #{tpu_custom_call.1} parent=1 // pred_region
      _
    $region13: #{tpu_custom_call.1} parent=1 // pred_fallthru
      _
    // Predicated region
    $region14: #{tpu_custom_call.1} parent=1 // pred_check
      _
    $region15: #{tpu_custom_call.1} parent=1 // pred_check_branch
      %22 = sbr.rel (0) target = $region17
    $region16: #{tpu_custom_call.1} parent=1 // pred_region
      %24 = vsyncadd [#allocation4], 0
      %s25 = sshll.u32 %s3, 4
      %s26 = int_to_ptr.hbm [resolvable:$true] %s25
      %s27 = sshll.u32 [#allocation3], 4
      %s28 = int_to_ptr.vmem [resolvable:$true] %s27
      %33 = dma.hbm_to_vmem [thread:$0]  %s26, 1024, %s28, [#allocation4], 128, 128, 8
    $region17: #{tpu_custom_call.1} parent=1 // pred_fallthru
      _
    // Predicated region
    $region18: #{tpu_custom_call.1} parent=1 // pred_check
      _
    $region19: #{tpu_custom_call.1} parent=1 // pred_check_branch
      %35 = sbr.rel (0) target = $region21
    $region20: #{tpu_custom_call.1} parent=1 // pred_region
      _
    $region21: #{tpu_custom_call.1} parent=1 // pred_fallthru
      _
    // Predicated region
    $region22: #{tpu_custom_call.1} parent=1 // pred_check
      _
    $region23: #{tpu_custom_call.1} parent=1 // pred_check_branch
      %37 = sbr.rel (0) target = $region25
    $region24: #{tpu_custom_call.1} parent=1 // pred_region
      _
    $region25: #{tpu_custom_call.1} parent=1 // pred_fallthru
      _
    // Predicated region
    $region26: #{tpu_custom_call.1} parent=1 // pred_check
      _
    $region27: #{tpu_custom_call.1} parent=1 // pred_check_branch
      %39 = sbr.rel (0) target = $region29
    $region28: #{tpu_custom_call.1} parent=1 // pred_region
      _
    $region29: #{tpu_custom_call.1} parent=1 // pred_fallthru
      _
    // Predicated region
    $region30: #{tpu_custom_call.1} parent=1 // pred_check
      _
    $region31: #{tpu_custom_call.1} parent=1 // pred_check_branch
      %41 = sbr.rel (0) target = $region33
    $region32: #{tpu_custom_call.1} parent=1 // pred_region
      %43 = dma.done [#allocation4], 1024
    $region33: #{tpu_custom_call.1} parent=1 // pred_fallthru
      _
    %v44 = vld [vmem:[%s0] sm:$0xff]
    %v45 = vld [vmem:[%s0 + $0x8] sm:$0xff]
    %v46 = vld [vmem:[%s1] sm:$0xff]
    %v47 = vld [vmem:[%s2] sm:$0x1]
    %v49 = vperm.slane %v47, 0
    %vm51 = vcmask 64512
    %v53 = vsel %vm51, %v44, 0
    %v56 = vsel %vm51, %v45, 0
    %58 = vmatpush.msra.mxu0 0.0
    %59 = vmatpush.msra.mxu0 0.0
    %60 = vmatpush.msra.mxu0 0.0
    %61 = vmatpush.msra.mxu0 0.0
    %62 = vmatpush.msra.mxu0 0.0
    %63 = vmatpush.msra.mxu0 0.0
    %64 = vmatpush.msra.mxu0 0.0
    %65 = vmatpush.msra.mxu0 0.0
    %66 = vmatpush.msra.mxu0 0.0
    %67 = vmatpush.msra.mxu0 0.0
    %68 = vmatpush.msra.mxu0 0.0
    %69 = vmatpush.msra.mxu0 0.0
    %70 = vmatpush.msra.mxu0 0.0
    %71 = vmatpush.msra.mxu0 0.0
    %72 = vmatpush.msra.mxu0 0.0
    %73 = vmatpush.msra.mxu0 %v46
    %74 = vmatmul.f32.gmra.mxu0 %v53
    %v75 = vpop.f32.mrf.mxu0
    %v76 = vadd.f32 %v49, %v75
    %77 = vmatmul.f32.gmra.mxu0 %v56
    %v78 = vpop.f32.mrf.mxu0
    %v79 = vadd.f32 %v49, %v78
    %80 = vdwg.mxu0
    %v81 = vmax.f32 %v76, 0.0
    %v82 = vmax.f32 %v79, 0.0
    %v83 = vld [vmem:[#allocation3] sm:$0xff]
    %v84 = vld [vmem:[#allocation3 + $0x8] sm:$0xff]
    %v85 = vld [vmem:[#allocation3 + $0x10] sm:$0xff]
    %v86 = vld [vmem:[#allocation3 + $0x18] sm:$0xff]
    %v87 = vld [vmem:[#allocation3 + $0x20] sm:$0xff]
    %v88 = vld [vmem:[#allocation3 + $0x28] sm:$0xff]
    %v89 = vld [vmem:[#allocation3 + $0x30] sm:$0xff]
    %v90 = vld [vmem:[#allocation3 + $0x38] sm:$0xff]
    %v91 = vld [vmem:[%s4] sm:$0x1]
    %v93 = vperm.slane %v91, 0
    %vm95 = vcmask 523264
    %v97 = vsel %vm95, %v81, 0
    %v100 = vsel %vm95, %v82, 0
    %102 = vmatpush.msra.mxu0 0.0
    %103 = vmatpush.msra.mxu0 0.0
    %104 = vmatpush.msra.mxu0 0.0
    %105 = vmatpush.msra.mxu0 0.0
    %106 = vmatpush.msra.mxu0 0.0
    %107 = vmatpush.msra.mxu0 0.0
    %108 = vmatpush.msra.mxu0 0.0
    %109 = vmatpush.msra.mxu0 0.0
    %110 = vmatpush.msra.mxu0 %v90
    %111 = vmatpush.msra.mxu0 %v89
    %112 = vmatpush.msra.mxu0 %v88
    %113 = vmatpush.msra.mxu0 %v87
    %114 = vmatpush.msra.mxu0 %v86
    %115 = vmatpush.msra.mxu0 %v85
    %116 = vmatpush.msra.mxu0 %v84
    %117 = vmatpush.msra.mxu0 %v83
    %118 = vmatmul.f32.gmra.mxu0 %v97
    %v119 = vpop.f32.mrf.mxu0
    %v120 = vadd.f32 %v93, %v119
    %121 = vmatmul.f32.gmra.mxu0 %v100
    %v122 = vpop.f32.mrf.mxu0
    %v123 = vadd.f32 %v93, %v122
    %124 = vdwg.mxu0
    %v125 = vmax.f32 %v120, 0.0
    %v126 = vmax.f32 %v123, 0.0
    %v127 = vld [vmem:[%s5] sm:$0x1]
    %v129 = vperm.slane %v127, 0
    %v131 = vmul.f32 %v125, %v129
    %v132 = vmul.f32 %v126, %v129
    %v133 = vsel %vm95, %v131, 0.0
    %134 = vadd.xlane.f32.xlu0 %v133
    %v135 = vpop.xlane.xlu0 %134
    %v136 = vsel %vm95, %v132, 0.0
    %137 = vadd.xlane.f32.xlu0 %v136
    %v138 = vpop.xlane.xlu0 %137
    %v139 = vld [vmem:[#allocation2] sm:$0x1]
    %v141 = vperm.slane %v139, 0
    %v143 = vadd.f32 %v135, %v141
    %v144 = vadd.f32 %v138, %v141
    %vm145 = vcmask 7168
    %146 = vst.msk [vmem:[%s7] sm:$0xff] %vm145, %v143
    %147 = vst.msk [vmem:[%s7 + $0x8] sm:$0xff] %vm145, %v144
    // Predicated region
    $region34: #{tpu_custom_call.1} parent=1 // pred_check
      _
    $region35: #{tpu_custom_call.1} parent=1 // pred_check_branch
      %149 = sbr.rel (0) target = $region37
    $region36: #{tpu_custom_call.1} parent=1 // pred_region
      _
    $region37: #{tpu_custom_call.1} parent=1 // pred_fallthru
      _
    // Predicated region
    $region38: #{tpu_custom_call.1} parent=1 // pred_check
      _
    $region39: #{tpu_custom_call.1} parent=1 // pred_check_branch
      %151 = sbr.rel (0) target = $region41
    $region40: #{tpu_custom_call.1} parent=1 // pred_region
      _
    $region41: #{tpu_custom_call.1} parent=1 // pred_fallthru
      _
    %152 = vsyncpa [#allocation4], 1

</llo_original>
